<compile_context>
chip_gen: v7x
topology: tpu7x:2x2x1
jax: 0.10.0
libtpu: 0.0.40
codegen_flags: <defaults>
</compile_context>

<pallas_src>
import jax
import jax.numpy as jnp
import numpy as np
from jax.experimental import pallas as pl
from jax.experimental.pallas import tpu as pltpu


# ----------------------------- Pallas kernel --------------------------------

def meanpool_kernel(adj_ref, x_ref, o_ref, acc_ref):
    """One grid step of out[b] = adj_scaled @ x[b] (N-tiled reduction).

    adj_ref: (M, TN)      pre-scaled proj_adj^T tile (divisor folded in)
    x_ref  : (BB, TN, TD) x tile for BB batches
    o_ref  : (BB, M, TD)  output tile (written on the last reduction step)
    acc_ref: (BB, M, TD)  f32 scratch accumulator
    """
    k = pl.program_id(2)

    @pl.when(k == 0)
    def _init():
        acc_ref[...] = jnp.zeros_like(acc_ref)

    # One MXU matmul per batch in the block (BB is a small compile-time const).
    for b in range(x_ref.shape[0]):
        acc_ref[b] += jnp.dot(adj_ref[...], x_ref[b],
                              preferred_element_type=jnp.float32)

    @pl.when(k == pl.num_programs(2) - 1)
    def _store():
        o_ref[...] = acc_ref[...].astype(o_ref.dtype)


# --------------------------- tile-size heuristics -----------------------------

def _largest_divisor_leq(n, cap):
    cap = max(1, min(n, cap))
    for c in range(cap, 0, -1):
        if n % c == 0:
            return c
    return 1


def _choose_tiles(B, N, M, D, itemsize, budget_bytes):
    """Pick (BB, TN, TD) so double-buffered tiles + scratch fit `budget_bytes`."""
    # D tile: keep the lane (minor) dim as wide as possible; a 128-multiple
    # divisor when D is large, otherwise the full D.
    if D <= 2048:
        td = D
    else:
        td = D
        for cand in (2048, 1024, 512, 256, 128):
            if D % cand == 0:
                td = cand
                break

    # N tile: keep adj fully resident unless it eats too much of the budget.
    if 2 * M * N * itemsize <= budget_bytes // 4:
        tn = N
    else:
        cap = max(128, (budget_bytes // 4) // (2 * M * itemsize))
        tn = _largest_divisor_leq(N, cap)

    def footprint(bb):
        return (2 * M * tn * itemsize           # adj tiles (double-buffered)
                + 2 * bb * tn * td * itemsize   # x tiles
                + 2 * bb * M * td * itemsize    # out tiles
                + bb * M * td * 4)              # f32 accumulator scratch

    bb = 1
    for cand in range(min(B, 8), 0, -1):
        if B % cand == 0 and footprint(cand) <= budget_bytes:
            bb = cand
            break
    return bb, tn, td


# ------------------------------- wrapper -------------------------------------

_VMEM_TILE_BUDGET = 28 * 1024 * 1024     # conservative: safe on v7x's 64 MiB VMEM
_VMEM_LIMIT_BYTES = 48 * 1024 * 1024     # explicit scoped-VMEM limit (with headroom)


def downsampling_forward(x, proj_adj, method="meanpool"):
    """Mirrors DownSampling.forward: x (B, N, D), proj_adj (N, M) -> (B, M, D)."""
    if method != "meanpool":
        # Reference module leaves x untouched for any other method.
        return x

    B, N, D = x.shape
    M = proj_adj.shape[1]

    # One-time O(M*N) prep, hoisted out of the grid: fold 1/colsum into the
    # transposed projection so the kernel body is matmul + cast only.
    # (A zero column sum yields inf/nan exactly like the PyTorch reference.)
    colsum = jnp.sum(proj_adj, axis=0)                              # (M,)
    adj_scaled = (proj_adj / colsum[None, :]).T.astype(x.dtype)     # (M, N)

    bb, tn, td = _choose_tiles(B, N, M, D, jnp.dtype(x.dtype).itemsize,
                               _VMEM_TILE_BUDGET)
    grid = (B // bb, pl.cdiv(D, td), pl.cdiv(N, tn))   # reduction (N) axis last

    return pl.pallas_call(
        meanpool_kernel,
        out_shape=jax.ShapeDtypeStruct((B, M, D), x.dtype),
        grid=grid,
        in_specs=[
            pl.BlockSpec((M, tn), lambda bi, di, ki: (0, ki)),
            pl.BlockSpec((bb, tn, td), lambda bi, di, ki: (bi, ki, di)),
        ],
        out_specs=pl.BlockSpec((bb, M, td), lambda bi, di, ki: (bi, 0, di)),
        scratch_shapes=[pltpu.VMEM((bb, M, td), jnp.float32)],
        compiler_params=pltpu.CompilerParams(
            dimension_semantics=("parallel", "parallel", "arbitrary"),
            vmem_limit_bytes=_VMEM_LIMIT_BYTES),
    )(adj_scaled, x)


# ------------------------------ pure-JAX ref ----------------------------------

def forward_ref(x, proj_adj):
    return (jnp.einsum("bnd,nm->bmd", x, proj_adj)
            / jnp.sum(proj_adj, axis=0)[None, :, None])


# ---------------------------------- main --------------------------------------

if __name__ == "__main__":
    key = jax.random.PRNGKey(0)

    # Shapes consistent with the module: x (b, n, d), proj_adj (n, m), n > m.
    B, N, M, D = 2, 16, 8, 32
    key, kx, ka = jax.random.split(key, 3)
    x = jax.random.normal(kx, (B, N, D), jnp.float32)
    # Strictly positive soft-assignment matrix -> non-zero column sums.
    proj_adj = jax.random.uniform(ka, (N, M), jnp.float32, minval=0.1, maxval=1.0)

    out = downsampling_forward(x, proj_adj, method="meanpool")
    jax.block_until_ready(out)
    np.testing.assert_allclose(np.asarray(out), np.asarray(forward_ref(x, proj_adj)),
                               rtol=1e-2, atol=1e-3)
    assert out.shape == (B, M, D)

    # Slightly larger shape to exercise multi-batch blocking + wider D tiles.
    B2, N2, M2, D2 = 4, 128, 32, 256
    key, kx2, ka2 = jax.random.split(key, 3)
    x2 = jax.random.normal(kx2, (B2, N2, D2), jnp.float32)
    proj_adj2 = jax.random.uniform(ka2, (N2, M2), jnp.float32, minval=0.1, maxval=1.0)
    out2 = downsampling_forward(x2, proj_adj2, method="meanpool")
    jax.block_until_ready(out2)
    np.testing.assert_allclose(np.asarray(out2), np.asarray(forward_ref(x2, proj_adj2)),
                               rtol=1e-2, atol=1e-3)
    assert out2.shape == (B2, M2, D2)

    # Non-meanpool method is an identity pass-through in the reference module.
    out_id = downsampling_forward(x, proj_adj, method="other")
    assert out_id.shape == x.shape

    print("KERNEL_OK")
</pallas_src>

<mosaic_0001>
module attributes {stable_mosaic.version = 11 : i64} {
  func.func @meanpool_kernel(%arg0: i32, %arg1: i32, %arg2: i32, %arg3: memref<8x16xf32, #tpu.memory_space<vmem>>, %arg4: memref<2x16x32xf32, #tpu.memory_space<vmem>>, %arg5: memref<2x8x32xf32, #tpu.memory_space<vmem>>, %arg6: memref<2x8x32xf32, #tpu.memory_space<vmem>>) attributes {dimension_semantics = [#tpu.dimension_semantics<parallel>, #tpu.dimension_semantics<parallel>, #tpu.dimension_semantics<arbitrary>], iteration_bounds = array<i64: 1, 1, 1>, scalar_prefetch = 0 : i64, scratch_operands = 1 : i64, tpu.core_type = #tpu.core_type<tc>, window_params = [{transform_indices = @transform_0, window_bounds = array<i64: 8, 16>}, {transform_indices = @transform_1, window_bounds = array<i64: 2, 16, 32>}, {transform_indices = @transform_2, window_bounds = array<i64: 2, 8, 32>}]} {
    %c0_i32 = arith.constant 0 : i32
    %0 = arith.cmpi eq, %arg2, %c0_i32 : i32
    %1 = arith.extui %0 : i1 to i32
    %c0_i32_0 = arith.constant 0 : i32
    %2 = arith.cmpi ne, %1, %c0_i32_0 : i32
    scf.if %2 {
      %cst_24 = arith.constant 0.000000e+00 : f32
      %26 = vector.broadcast %cst_24 : f32 to vector<2x8x32xf32>
      %c0_25 = arith.constant 0 : index
      %c0_26 = arith.constant 0 : index
      %c0_27 = arith.constant 0 : index
      %27 = vector.load %arg6[%c0_25, %c0_26, %c0_27] : memref<2x8x32xf32, #tpu.memory_space<vmem>>, vector<2x8x32xf32>
      tpu.vector_store %arg6[%c0_25, %c0_26, %c0_27], %26 {strides = array<i32>} : memref<2x8x32xf32, #tpu.memory_space<vmem>>, vector<2x8x32xf32>,
    } else {
    }
    %c0 = arith.constant 0 : index
    %c0_1 = arith.constant 0 : index
    %c0_2 = arith.constant 0 : index
    %3 = vector.load %arg6[%c0, %c0_1, %c0_2] : memref<2x8x32xf32, #tpu.memory_space<vmem>>, vector<1x8x32xf32>
    %4 = vector.shape_cast %3 : vector<1x8x32xf32> to vector<8x32xf32>
    %c0_3 = arith.constant 0 : index
    %c0_4 = arith.constant 0 : index
    %5 = vector.load %arg3[%c0_3, %c0_4] : memref<8x16xf32, #tpu.memory_space<vmem>>, vector<8x16xf32>
    %c0_5 = arith.constant 0 : index
    %c0_6 = arith.constant 0 : index
    %c0_7 = arith.constant 0 : index
    %6 = vector.load %arg4[%c0_5, %c0_6, %c0_7] : memref<2x16x32xf32, #tpu.memory_space<vmem>>, vector<1x16x32xf32>
    %7 = vector.shape_cast %6 : vector<1x16x32xf32> to vector<16x32xf32>
    %cst = arith.constant dense<0.000000e+00> : vector<8x32xf32>
    %8 = tpu.matmul %5, %7, %cst {dimension_numbers = #tpu.dot_dimension_numbers<[1], [0], [0], [1], [0, 0, 1, 1], [], []>} : vector<8x16xf32>, vector<16x32xf32>, vector<8x32xf32> -> vector<8x32xf32>
    %9 = arith.addf %4, %8 : vector<8x32xf32>
    %c0_8 = arith.constant 0 : index
    %c0_9 = arith.constant 0 : index
    %c0_10 = arith.constant 0 : index
    %10 = vector.load %arg6[%c0_8, %c0_9, %c0_10] : memref<2x8x32xf32, #tpu.memory_space<vmem>>, vector<1x8x32xf32>
    %11 = vector.shape_cast %10 : vector<1x8x32xf32> to vector<8x32xf32>
    %12 = vector.shape_cast %9 : vector<8x32xf32> to vector<1x8x32xf32>
    tpu.vector_store %arg6[%c0_8, %c0_9, %c0_10], %12 {strides = array<i32>} : memref<2x8x32xf32, #tpu.memory_space<vmem>>, vector<1x8x32xf32>,
    %c1 = arith.constant 1 : index
    %c0_11 = arith.constant 0 : index
    %c0_12 = arith.constant 0 : index
    %13 = vector.load %arg6[%c1, %c0_11, %c0_12] : memref<2x8x32xf32, #tpu.memory_space<vmem>>, vector<1x8x32xf32>
    %14 = vector.shape_cast %13 : vector<1x8x32xf32> to vector<8x32xf32>
    %c0_13 = arith.constant 0 : index
    %c0_14 = arith.constant 0 : index
    %15 = vector.load %arg3[%c0_13, %c0_14] : memref<8x16xf32, #tpu.memory_space<vmem>>, vector<8x16xf32>
    %c1_15 = arith.constant 1 : index
    %c0_16 = arith.constant 0 : index
    %c0_17 = arith.constant 0 : index
    %16 = vector.load %arg4[%c1_15, %c0_16, %c0_17] : memref<2x16x32xf32, #tpu.memory_space<vmem>>, vector<1x16x32xf32>
    %17 = vector.shape_cast %16 : vector<1x16x32xf32> to vector<16x32xf32>
    %cst_18 = arith.constant dense<0.000000e+00> : vector<8x32xf32>
    %18 = tpu.matmul %15, %17, %cst_18 {dimension_numbers = #tpu.dot_dimension_numbers<[1], [0], [0], [1], [0, 0, 1, 1], [], []>} : vector<8x16xf32>, vector<16x32xf32>, vector<8x32xf32> -> vector<8x32xf32>
    %19 = arith.addf %14, %18 : vector<8x32xf32>
    %c1_19 = arith.constant 1 : index
    %c0_20 = arith.constant 0 : index
    %c0_21 = arith.constant 0 : index
    %20 = vector.load %arg6[%c1_19, %c0_20, %c0_21] : memref<2x8x32xf32, #tpu.memory_space<vmem>>, vector<1x8x32xf32>
    %21 = vector.shape_cast %20 : vector<1x8x32xf32> to vector<8x32xf32>
    %22 = vector.shape_cast %19 : vector<8x32xf32> to vector<1x8x32xf32>
    tpu.vector_store %arg6[%c1_19, %c0_20, %c0_21], %22 {strides = array<i32>} : memref<2x8x32xf32, #tpu.memory_space<vmem>>, vector<1x8x32xf32>,
    %c0_i32_22 = arith.constant 0 : i32
    %23 = arith.cmpi eq, %arg2, %c0_i32_22 : i32
    %24 = arith.extui %23 : i1 to i32
    %c0_i32_23 = arith.constant 0 : i32
    %25 = arith.cmpi ne, %24, %c0_i32_23 : i32
    scf.if %25 {
      %c0_24 = arith.constant 0 : index
      %c0_25 = arith.constant 0 : index
      %c0_26 = arith.constant 0 : index
      %26 = vector.load %arg6[%c0_24, %c0_25, %c0_26] : memref<2x8x32xf32, #tpu.memory_space<vmem>>, vector<2x8x32xf32>
      %c0_27 = arith.constant 0 : index
      %c0_28 = arith.constant 0 : index
      %c0_29 = arith.constant 0 : index
      %27 = vector.load %arg5[%c0_27, %c0_28, %c0_29] : memref<2x8x32xf32, #tpu.memory_space<vmem>>, vector<2x8x32xf32>
      tpu.vector_store %arg5[%c0_27, %c0_28, %c0_29], %26 {strides = array<i32>} : memref<2x8x32xf32, #tpu.memory_space<vmem>>, vector<2x8x32xf32>,
    } else {
    }
    return
  }
  func.func @transform_0(%arg0: i32, %arg1: i32, %arg2: i32) -> (i32, i32) {
    %c0_i32 = arith.constant 0 : i32
    %c0_i32_0 = arith.constant 0 : i32
    return %c0_i32, %arg2 : i32, i32
  }
  func.func @transform_1(%arg0: i32, %arg1: i32, %arg2: i32) -> (i32, i32, i32) {
    %c0_i32 = arith.constant 0 : i32
    return %arg0, %arg2, %arg1 : i32, i32, i32
  }
  func.func @transform_2(%arg0: i32, %arg1: i32, %arg2: i32) -> (i32, i32, i32) {
    %c0_i32 = arith.constant 0 : i32
    %c0_i32_0 = arith.constant 0 : i32
    return %arg0, %c0_i32, %arg1 : i32, i32, i32
  }
}

</mosaic_0001>

<llo_original>
// kernel: tpu_custom_call.1
$region0: #{tpu_custom_call.1}
  #allocation0 [shape = 'u32[]', space=smem, size = 0x4, offset = 0x4, fixed_abs, tag = 'smem constant byte address 0x4 - core index']
  #allocation1 [shape = 'u32[144,128]{1,0:T(1,128)}', space=vmem, size = 0x12000, scoped, tag = 'internal scratch']
  #allocation2 [shape = 'f32[2,8,32]{2,1,0:T(8,128)}', space=vmem, size = 0x2000, scoped, tag = 'scratch operand']
  %s0 = inlined_call_operand.hbm [shape: f32[8,16], index: 0, kind: input, shape index: {}]
  %s1 = inlined_call_operand.hbm [shape: f32[2,16,32], index: 1, kind: input, shape index: {}]
  %s2 = inlined_call_operand.hbm [shape: f32[2,8,32], index: 2, kind: output, shape index: {}]
  %s3 = sld [smem:[#allocation0]]
  $region34: #{tpu_custom_call.1} parent=0
    _
  %s5 = ssub.s32 1, %s3
  %s6 = scalar_select 0, %s5, %s3
  $region1: #{tpu_custom_call.1} parent=0
    #allocation3 [shape = 'u8[4096]{0}', space=vmem, size = 0x1000, scoped, tag = 'input window, operand 0, single buffered']
    #allocation4 [shape = 's32[1]{0}', space=sflag, size = 0x4, scoped, tag = 'scoped memory for tpu_custom_call.1']
    #allocation5 [shape = 's32[1]{0}', space=sflag, size = 0x4, scoped, tag = 'scoped memory for tpu_custom_call.1']
    #allocation6 [shape = 'u8[16384]{0}', space=vmem, size = 0x4000, scoped, tag = 'input window, operand 1, single buffered']
    #allocation7 [shape = 's32[1]{0}', space=sflag, size = 0x4, scoped, tag = 'scoped memory for tpu_custom_call.1']
    #allocation8 [shape = 'u8[8192]{0}', space=vmem, size = 0x2000, scoped, tag = 'output window, operand 0, single buffered']
    %7 = vsyncpa [#allocation4], 0
    %8 = vsyncpa [#allocation7], 0
    %9 = vsyncpa [#allocation5], 0
    // Predicated region
    $region2: #{tpu_custom_call.1} parent=1 // pred_check
      _
    $region3: #{tpu_custom_call.1} parent=1 // pred_check_branch
      %11 = sbr.rel (0) target = $region5
    $region4: #{tpu_custom_call.1} parent=1 // pred_region
      %s13 = ssub.s32 128, 128
      %14 = vsyncadd [#allocation4], %s13
      %s16 = sshll.u32 [#allocation3], 4
      %s17 = int_to_ptr.vmem [resolvable:$true] %s16
      %19 = dma.hbm_to_vmem [thread:$0]  %s0, 128, %s17, [#allocation4]
    $region5: #{tpu_custom_call.1} parent=1 // pred_fallthru
      _
    // Predicated region
    $region6: #{tpu_custom_call.1} parent=1 // pred_check
      _
    $region7: #{tpu_custom_call.1} parent=1 // pred_check_branch
      %21 = sbr.rel (0) target = $region9
    $region8: #{tpu_custom_call.1} parent=1 // pred_region
      %s23 = ssub.s32 512, 512
      %24 = vsyncadd [#allocation7], %s23
      %s25 = sshll.u32 [#allocation6], 4
      %s26 = int_to_ptr.vmem [resolvable:$true] %s25
      %31 = dma.hbm_to_vmem [thread:$0]  %s1, 512, %s26, [#allocation7], 128, 128, 8
    $region9: #{tpu_custom_call.1} parent=1 // pred_fallthru
      _
    // Predicated region
    $region10: #{tpu_custom_call.1} parent=1 // pred_check
      _
    $region11: #{tpu_custom_call.1} parent=1 // pred_check_branch
      %33 = sbr.rel (0) target = $region13
    $region12: #{tpu_custom_call.1} parent=1 // pred_region
      %34 = dma.done [#allocation4], 128
    $region13: #{tpu_custom_call.1} parent=1 // pred_fallthru
      _
    // Predicated region
    $region14: #{tpu_custom_call.1} parent=1 // pred_check
      _
    $region15: #{tpu_custom_call.1} parent=1 // pred_check_branch
      %36 = sbr.rel (0) target = $region17
    $region16: #{tpu_custom_call.1} parent=1 // pred_region
      %37 = dma.done [#allocation7], 512
    $region17: #{tpu_custom_call.1} parent=1 // pred_fallthru
      _
    %p38 = scmp.eq.s32.totalorder 0, 0
    // Predicated region
    $region18: #{tpu_custom_call.1} parent=1 // pred_check
      %p39 = pneg %p38
    $region19: #{tpu_custom_call.1} parent=1 // pred_check_branch
      %41 = sbr.rel (%p39) target = $region21
    $region20: #{tpu_custom_call.1} parent=1 // pred_region
      %vm42 = vcmask 261120
      %43 = vst.msk [vmem:[#allocation2] sm:$0xff] %vm42, 0.0
      %44 = vst.msk [vmem:[#allocation2 + $0x8] sm:$0xff] %vm42, 0.0
    $region21: #{tpu_custom_call.1} parent=1 // pred_fallthru
      _
    %v45 = vld [vmem:[#allocation2] sm:$0xff]
    %v46 = vld [vmem:[#allocation3] sm:$0xff]
    %v47 = vld [vmem:[#allocation6] sm:$0xff]
    %v48 = vld [vmem:[#allocation6 + $0x8] sm:$0xff]
    %vm49 = vcmask 130048
    %v51 = vsel %vm49, %v46, 0
    %53 = vmatprep.subr.mxu0 0.0
    %54 = vmatpush1.msra.mxu0 %v47
    %55 = vmatprep.subr.mxu0 0.0
    %56 = vmatpush1.msra.mxu0 %v48
    %57 = vmatprep.subr.mxu0 0.0
    %58 = vmatpush1.msra.mxu0 0.0
    %59 = vmatprep.subr.mxu0 0.0
    %60 = vmatpush1.msra.mxu0 0.0
    %61 = vmatprep.subr.mxu0 0.0
    %62 = vmatpush1.msra.mxu0 0.0
    %63 = vmatprep.subr.mxu0 0.0
    %64 = vmatpush1.msra.mxu0 0.0
    %65 = vmatprep.subr.mxu0 0.0
    %66 = vmatpush1.msra.mxu0 0.0
    %67 = vmatprep.subr.mxu0 0.0
    %68 = vmatpush1.msra.mxu0 0.0
    %69 = vmatprep.subr.mxu0 0.0
    %70 = vmatpush1.msra.mxu0 0.0
    %71 = vmatprep.subr.mxu0 0.0
    %72 = vmatpush1.msra.mxu0 0.0
    %73 = vmatprep.subr.mxu0 0.0
    %74 = vmatpush1.msra.mxu0 0.0
    %75 = vmatprep.subr.mxu0 0.0
    %76 = vmatpush1.msra.mxu0 0.0
    %77 = vmatprep.subr.mxu0 0.0
    %78 = vmatpush1.msra.mxu0 0.0
    %79 = vmatprep.subr.mxu0 0.0
    %80 = vmatpush1.msra.mxu0 0.0
    %81 = vmatprep.subr.mxu0 0.0
    %82 = vmatpush1.msra.mxu0 0.0
    %83 = vmatprep.subr.mxu0 0.0
    %84 = vmatpush1.msra.mxu0 0.0
    %85 = vmatprep.subr.mxu0 0.0
    %86 = vmatpush1.msra.mxu0 0.0
    %87 = vmatprep.subr.mxu0 0.0
    %88 = vmatpush1.msra.mxu0 0.0
    %89 = vmatprep.subr.mxu0 0.0
    %90 = vmatpush1.msra.mxu0 0.0
    %91 = vmatprep.subr.mxu0 0.0
    %92 = vmatpush1.msra.mxu0 0.0
    %93 = vmatprep.subr.mxu0 0.0
    %94 = vmatpush1.msra.mxu0 0.0
    %95 = vmatprep.subr.mxu0 0.0
    %96 = vmatpush1.msra.mxu0 0.0
    %97 = vmatprep.subr.mxu0 0.0
    %98 = vmatpush1.msra.mxu0 0.0
    %99 = vmatprep.subr.mxu0 0.0
    %100 = vmatpush1.msra.mxu0 0.0
    %101 = vmatprep.subr.mxu0 0.0
    %102 = vmatpush1.msra.mxu0 0.0
    %103 = vmatprep.subr.mxu0 0.0
    %104 = vmatpush1.msra.mxu0 0.0
    %105 = vmatprep.subr.mxu0 0.0
    %106 = vmatpush1.msra.mxu0 0.0
    %107 = vmatprep.subr.mxu0 0.0
    %108 = vmatpush1.msra.mxu0 0.0
    %109 = vmatprep.subr.mxu0 0.0
    %110 = vmatpush1.msra.mxu0 0.0
    %111 = vmatprep.subr.mxu0 0.0
    %112 = vmatpush1.msra.mxu0 0.0
    %113 = vmatprep.subr.mxu0 0.0
    %114 = vmatpush1.msra.mxu0 0.0
    %115 = vmatprep.subr.mxu0 0.0
    %116 = vmatpush1.msra.mxu0 0.0
    %117 = vmatprep.mubr.f32.mxu0 0.0
    %118 = vmatmul.mubr.f32.gmra.mrb[0].mxu0 %v51
    %v119 = vpop.f32.mrb[0].mxu0
    %v120 = vadd.f32 0.0, %v119
    %v121 = vpop.f32.mrb[0].mxu0
    %122 = vdwg.mxu0
    %v123 = vadd.f32 %v45, %v120
    %vm124 = vcmask 261120
    %125 = vst.msk [vmem:[#allocation2] sm:$0xff] %vm124, %v123
    %s126 = scalar_lea.vmem [#allocation2], 8
    %v127 = vld [vmem:[%s126] sm:$0xff]
    %v128 = vld [vmem:[#allocation3] sm:$0xff]
    %s129 = scalar_lea.vmem [#allocation6], 16
    %v130 = vld [vmem:[%s129] sm:$0xff]
    %v131 = vld [vmem:[%s129 + $0x8] sm:$0xff]
    %v133 = vsel %vm49, %v128, 0
    %135 = vmatprep.subr.mxu0 0.0
    %136 = vmatpush1.msra.mxu0 %v130
    %137 = vmatprep.subr.mxu0 0.0
    %138 = vmatpush1.msra.mxu0 %v131
    %139 = vmatprep.subr.mxu0 0.0
    %140 = vmatpush1.msra.mxu0 0.0
    %141 = vmatprep.subr.mxu0 0.0
    %142 = vmatpush1.msra.mxu0 0.0
    %143 = vmatprep.subr.mxu0 0.0
    %144 = vmatpush1.msra.mxu0 0.0
    %145 = vmatprep.subr.mxu0 0.0
    %146 = vmatpush1.msra.mxu0 0.0
    %147 = vmatprep.subr.mxu0 0.0
    %148 = vmatpush1.msra.mxu0 0.0
    %149 = vmatprep.subr.mxu0 0.0
    %150 = vmatpush1.msra.mxu0 0.0
    %151 = vmatprep.subr.mxu0 0.0
    %152 = vmatpush1.msra.mxu0 0.0
    %153 = vmatprep.subr.mxu0 0.0
    %154 = vmatpush1.msra.mxu0 0.0
    %155 = vmatprep.subr.mxu0 0.0
    %156 = vmatpush1.msra.mxu0 0.0
    %157 = vmatprep.subr.mxu0 0.0
    %158 = vmatpush1.msra.mxu0 0.0
    %159 = vmatprep.subr.mxu0 0.0
    %160 = vmatpush1.msra.mxu0 0.0
    %161 = vmatprep.subr.mxu0 0.0
    %162 = vmatpush1.msra.mxu0 0.0
    %163 = vmatprep.subr.mxu0 0.0
    %164 = vmatpush1.msra.mxu0 0.0
    %165 = vmatprep.subr.mxu0 0.0
    %166 = vmatpush1.msra.mxu0 0.0
    %167 = vmatprep.subr.mxu0 0.0
    %168 = vmatpush1.msra.mxu0 0.0
    %169 = vmatprep.subr.mxu0 0.0
    %170 = vmatpush1.msra.mxu0 0.0
    %171 = vmatprep.subr.mxu0 0.0
    %172 = vmatpush1.msra.mxu0 0.0
    %173 = vmatprep.subr.mxu0 0.0
    %174 = vmatpush1.msra.mxu0 0.0
    %175 = vmatprep.subr.mxu0 0.0
    %176 = vmatpush1.msra.mxu0 0.0
    %177 = vmatprep.subr.mxu0 0.0
    %178 = vmatpush1.msra.mxu0 0.0
    %179 = vmatprep.subr.mxu0 0.0
    %180 = vmatpush1.msra.mxu0 0.0
    %181 = vmatprep.subr.mxu0 0.0
    %182 = vmatpush1.msra.mxu0 0.0
    %183 = vmatprep.subr.mxu0 0.0
    %184 = vmatpush1.msra.mxu0 0.0
    %185 = vmatprep.subr.mxu0 0.0
    %186 = vmatpush1.msra.mxu0 0.0
    %187 = vmatprep.subr.mxu0 0.0
    %188 = vmatpush1.msra.mxu0 0.0
    %189 = vmatprep.subr.mxu0 0.0
    %190 = vmatpush1.msra.mxu0 0.0
    %191 = vmatprep.subr.mxu0 0.0
    %192 = vmatpush1.msra.mxu0 0.0
    %193 = vmatprep.subr.mxu0 0.0
    %194 = vmatpush1.msra.mxu0 0.0
    %195 = vmatprep.subr.mxu0 0.0
    %196 = vmatpush1.msra.mxu0 0.0
    %197 = vmatprep.subr.mxu0 0.0
    %198 = vmatpush1.msra.mxu0 0.0
    %199 = vmatprep.mubr.f32.mxu0 0.0
    %200 = vmatmul.mubr.f32.gmra.mrb[0].mxu0 %v133
    %v201 = vpop.f32.mrb[0].mxu0
    %v202 = vadd.f32 0.0, %v201
    %v203 = vpop.f32.mrb[0].mxu0
    %204 = vdwg.mxu0
    %v205 = vadd.f32 %v127, %v202
    %206 = vst.msk [vmem:[%s126] sm:$0xff] %vm124, %v205
    // Predicated region
    $region22: #{tpu_custom_call.1} parent=1 // pred_check
      %p207 = pneg %p38
    $region23: #{tpu_custom_call.1} parent=1 // pred_check_branch
      %209 = sbr.rel (%p207) target = $region25
    $region24: #{tpu_custom_call.1} parent=1 // pred_region
      %v210 = vld [vmem:[#allocation2] sm:$0xff]
      %v211 = vld [vmem:[#allocation2 + $0x8] sm:$0xff]
      %212 = vst.msk [vmem:[#allocation8] sm:$0xff] %vm124, %v210
      %213 = vst.msk [vmem:[#allocation8 + $0x8] sm:$0xff] %vm124, %v211
    $region25: #{tpu_custom_call.1} parent=1 // pred_fallthru
      _
    // Predicated region
    $region26: #{tpu_custom_call.1} parent=1 // pred_check
      _
    $region27: #{tpu_custom_call.1} parent=1 // pred_check_branch
      %215 = sbr.rel (0) target = $region29
    $region28: #{tpu_custom_call.1} parent=1 // pred_region
      %s217 = ssub.s32 256, 256
      %218 = vsyncadd [#allocation5], %s217
      %s219 = sshll.u32 [#allocation8], 4
      %s220 = int_to_ptr.vmem [resolvable:$true] %s219
      %225 = dma.vmem_to_hbm [thread:$0]  %s220, 256, %s2, [#allocation5], 128, 128, 8
    $region29: #{tpu_custom_call.1} parent=1 // pred_fallthru
      _
    // Predicated region
    $region30: #{tpu_custom_call.1} parent=1 // pred_check
      _
    $region31: #{tpu_custom_call.1} parent=1 // pred_check_branch
      %227 = sbr.rel (0) target = $region33
    $region32: #{tpu_custom_call.1} parent=1 // pred_region
      %228 = dma.done [#allocation5], 256
    $region33: #{tpu_custom_call.1} parent=1 // pred_fallthru
      _
    %229 = vsyncpa [#allocation4], 1
    %230 = vsyncpa [#allocation7], 1
    %231 = vsyncpa [#allocation5], 1

</llo_original>
